<compile_context>
chip_gen: v6e
topology: v6e:2x2x1
jax: 0.10.0
libtpu: 0.0.40
codegen_flags: <defaults>
</compile_context>

<pallas_src>
import functools

import jax
import jax.numpy as jnp
from jax.experimental import pallas as pl
from jax.experimental.pallas import tpu as pltpu


# ---------------------------------------------------------------------------
# Kernel
# ---------------------------------------------------------------------------
def _contrast_loss_kernel(m_ref, x1_ref, x2_ref, y_ref, out_ref, *, true_b, tb):
    # m_ref:   SMEM f32[1]        -- margin
    # x1_ref:  VMEM (TB, D)       -- native dtype, upcast in-kernel
    # x2_ref:  VMEM (TB, D)
    # y_ref:   VMEM (TB, 1) f32   -- 0/1 labels (ragged tail rows are garbage)
    # out_ref: VMEM (8, 128) f32  -- block partial sum in [0, 0], zeros elsewhere
    m = m_ref[0]

    x1 = x1_ref[...].astype(jnp.float32)
    x2 = x2_ref[...].astype(jnp.float32)
    diff = x1 - x2                                          # (TB, D)
    d2 = jnp.sum(diff * diff, axis=1, keepdims=True)        # (TB, 1) = ||.||^2
    d = jnp.sqrt(d2)                                        # (TB, 1) = ||x1-x2||

    y = y_ref[...].astype(jnp.float32)                      # (TB, 1)
    hinge = jnp.maximum(m - d, 0.0)                         # clamp(m - d, min=0)
    row_loss = y * d2 + (1.0 - y) * hinge * hinge           # (TB, 1)

    # Mask rows past the true batch size (ragged last block reads garbage);
    # jnp.where never propagates NaN/Inf from the unselected branch.
    row = pl.program_id(0) * tb + jax.lax.broadcasted_iota(jnp.int32, (tb, 1), 0)
    row_loss = jnp.where(row < true_b, row_loss, 0.0)

    s = jnp.sum(row_loss)                                   # scalar block partial

    # Lane-dense (8, 128) output tile: partial sum at [0, 0], zeros elsewhere.
    r = jax.lax.broadcasted_iota(jnp.int32, (8, 128), 0)
    c = jax.lax.broadcasted_iota(jnp.int32, (8, 128), 1)
    out_ref[...] = jnp.where((r == 0) & (c == 0), s, 0.0)


# ---------------------------------------------------------------------------
# Tiling / VMEM heuristics
# ---------------------------------------------------------------------------
_TARGET_TILE_BYTES = 4 * 1024 * 1024   # ~4 MiB per x tile keeps DMA on the roofline


def _round_up(x, n):
    return ((x + n - 1) // n) * n


def _vmem_budget_and_limit():
    """Pipeline budget + vmem_limit. Conservative (v7x-safe) by default,
    raised on 128 MiB-VMEM chips (v5e/v6e)."""
    budget, limit = 16 * 1024 * 1024, 32 * 1024 * 1024
    try:
        info = pltpu.get_tpu_info()
        vmem_cap = getattr(info, "vmem_capacity_bytes", 0) or 0
        if vmem_cap >= 100 * 1024 * 1024:
            budget, limit = 48 * 1024 * 1024, 64 * 1024 * 1024
    except Exception:
        pass  # fall back to the everywhere-safe defaults
    return budget, limit


def _pick_batch_tile(B, D, itemsize, pipeline_budget_bytes):
    """Pick TB (multiple of the dtype's packed sublane count) targeting ~4 MiB
    per x tile of VMEM-padded bytes, within the double-buffer budget."""
    sub = max(8, (8 * 4) // itemsize)        # 8 for f32, 16 for bf16, 32 for int8
    d_pad = _round_up(D, 128)                # lane-padded feature dim in VMEM
    x_row_bytes = d_pad * itemsize           # one row of x1 (or x2) in VMEM
    y_row_bytes = 128 * 4                    # (TB, 1) f32 column pads to 128 lanes
    # Double-buffered pipeline footprint per batch row (x1 + x2 + y).
    per_row_pipe = 2 * (2 * x_row_bytes + y_row_bytes)

    budget_rows = max(pipeline_budget_bytes // per_row_pipe, sub)
    target_rows = max(_TARGET_TILE_BYTES // x_row_bytes, sub)
    tb = min(budget_rows, target_rows)
    tb = max(sub, (tb // sub) * sub)

    b_ceil = _round_up(B, sub)
    tb = min(tb, b_ceil)

    # v7x megacore: make sure the "parallel" axis has >= 2 blocks when possible.
    if pl.cdiv(B, tb) == 1 and b_ceil >= 2 * sub:
        tb = _round_up(pl.cdiv(b_ceil, 2), sub)

    num_blocks = pl.cdiv(B, tb)
    return tb, num_blocks


# ---------------------------------------------------------------------------
# Wrapper
# ---------------------------------------------------------------------------
def contrast_loss(x1, x2, y, m=1.0):
    """Pallas implementation of ContrastLoss.forward.

    x1, x2: (B, D) float (any float dtype; upcast to f32 inside the kernel)
    y:      (B,)   labels in {0, 1}
    returns scalar float32 loss
    """
    assert x1.shape == x2.shape and x1.ndim == 2
    assert x1.dtype == x2.dtype
    B, D = x1.shape
    itemsize = jnp.dtype(x1.dtype).itemsize

    budget, limit = _vmem_budget_and_limit()
    TB, num_blocks = _pick_batch_tile(B, D, itemsize, budget)

    # Only y is reshaped (tiny, B*4 bytes); x1/x2 are streamed un-padded.
    y2 = y.astype(jnp.float32).reshape(B, 1)
    m_arr = jnp.asarray([m], dtype=jnp.float32)             # SMEM scalar

    kernel = functools.partial(_contrast_loss_kernel, true_b=B, tb=TB)

    cost = pl.CostEstimate(
        flops=4 * B * D,
        transcendentals=B,                                   # sqrt per row
        bytes_accessed=2 * B * D * itemsize + B * 4 + num_blocks * 8 * 128 * 4,
    )

    partial = pl.pallas_call(
        kernel,
        out_shape=jax.ShapeDtypeStruct((num_blocks * 8, 128), jnp.float32),
        grid=(num_blocks,),
        in_specs=[
            pl.BlockSpec(memory_space=pltpu.MemorySpace.SMEM),   # m
            pl.BlockSpec((TB, D), lambda i: (i, 0)),             # x1 tile (ragged tail OK)
            pl.BlockSpec((TB, D), lambda i: (i, 0)),             # x2 tile
            pl.BlockSpec((TB, 1), lambda i: (i, 0)),             # y tile
        ],
        out_specs=pl.BlockSpec((8, 128), lambda i: (i, 0)),      # per-block partial sum
        compiler_params=pltpu.CompilerParams(
            dimension_semantics=("parallel",),
            vmem_limit_bytes=limit,
        ),
        cost_estimate=cost,
    )(m_arr, x1, x2, y2)

    # Tiny final reduction outside the kernel; divide by the TRUE batch size.
    return jnp.sum(partial) / jnp.float32(B)


# ---------------------------------------------------------------------------
# Pure-JAX reference (mirrors the PyTorch module)
# ---------------------------------------------------------------------------
def contrast_loss_ref(x1, x2, y, m=1.0):
    x1 = x1.astype(jnp.float32)
    x2 = x2.astype(jnp.float32)
    y = y.astype(jnp.float32)
    d = jnp.linalg.norm(x1 - x2, ord=2, axis=1)
    l = y * d**2 + (1.0 - y) * jnp.maximum(m - d, 0.0) ** 2
    return jnp.mean(l)


if __name__ == "__main__":
    key = jax.random.PRNGKey(0)
    k1, k2, k3, k4, k5, k6 = jax.random.split(key, 6)

    # --- Small f32 case ----------------------------------------------------
    B, D = 8, 32
    x1 = jax.random.normal(k1, (B, D), dtype=jnp.float32)
    x2 = jax.random.normal(k2, (B, D), dtype=jnp.float32)
    y = jax.random.bernoulli(k3, 0.5, (B,)).astype(jnp.float32)

    loss = contrast_loss(x1, x2, y, m=1.0)
    jax.block_until_ready(loss)
    ref = contrast_loss_ref(x1, x2, y, m=1.0)
    assert jnp.allclose(loss, ref, rtol=1e-5, atol=1e-5), (loss, ref)

    # --- Ragged batch + bf16 case (exercises masking, sublane packing, 2 blocks) --
    B2, D2 = 37, 256
    x1b = jax.random.normal(k4, (B2, D2), dtype=jnp.bfloat16)
    x2b = jax.random.normal(k5, (B2, D2), dtype=jnp.bfloat16)
    yb = jax.random.bernoulli(k6, 0.5, (B2,)).astype(jnp.float32)

    loss2 = contrast_loss(x1b, x2b, yb, m=0.5)
    jax.block_until_ready(loss2)
    ref2 = contrast_loss_ref(x1b, x2b, yb, m=0.5)
    assert jnp.allclose(loss2, ref2, rtol=1e-4, atol=1e-4), (loss2, ref2)

    print("KERNEL_OK")
</pallas_src>

<mosaic_0001>
module attributes {stable_mosaic.version = 11 : i64} {
  func.func @_contrast_loss_kernel(%arg0: i32, %arg1: memref<1xf32, #tpu.memory_space<smem>>, %arg2: memref<8x32xf32, #tpu.memory_space<vmem>>, %arg3: memref<8x32xf32, #tpu.memory_space<vmem>>, %arg4: memref<8x1xf32, #tpu.memory_space<vmem>>, %arg5: memref<8x128xf32, #tpu.memory_space<vmem>>) attributes {dimension_semantics = [#tpu.dimension_semantics<parallel>], iteration_bounds = array<i64: 1>, scalar_prefetch = 0 : i64, scratch_operands = 0 : i64, tpu.core_type = #tpu.core_type<tc>, window_params = [{transform_indices = @transform_0, window_bounds = array<i64: 1>}, {transform_indices = @transform_1, window_bounds = array<i64: 8, 32>}, {transform_indices = @transform_2, window_bounds = array<i64: 8, 32>}, {transform_indices = @transform_3, window_bounds = array<i64: 8, 1>}, {transform_indices = @transform_4, window_bounds = array<i64: 8, 128>}]} {
    %c0 = arith.constant 0 : index
    %0 = memref.load %arg1[%c0] : memref<1xf32, #tpu.memory_space<smem>>
    %c0_0 = arith.constant 0 : index
    %c0_1 = arith.constant 0 : index
    %1 = vector.load %arg2[%c0_0, %c0_1] : memref<8x32xf32, #tpu.memory_space<vmem>>, vector<8x32xf32>
    %c0_2 = arith.constant 0 : index
    %c0_3 = arith.constant 0 : index
    %2 = vector.load %arg3[%c0_2, %c0_3] : memref<8x32xf32, #tpu.memory_space<vmem>>, vector<8x32xf32>
    %3 = arith.subf %1, %2 : vector<8x32xf32>
    %4 = arith.mulf %3, %3 : vector<8x32xf32>
    %cst = arith.constant dense<0.000000e+00> : vector<8xf32>
    %5 = vector.multi_reduction <add>, %4, %cst [1] : vector<8x32xf32> to vector<8xf32>
    %6 = vector.shape_cast %5 : vector<8xf32> to vector<8x1xf32>
    %7 = math.sqrt %6 : vector<8x1xf32>
    %c0_4 = arith.constant 0 : index
    %c0_5 = arith.constant 0 : index
    %8 = vector.load %arg4[%c0_4, %c0_5] : memref<8x1xf32, #tpu.memory_space<vmem>>, vector<8x1xf32>
    %9 = vector.broadcast %0 : f32 to vector<8x1xf32>
    %10 = arith.subf %9, %7 : vector<8x1xf32>
    %cst_6 = arith.constant 0.000000e+00 : f32
    %11 = vector.broadcast %cst_6 : f32 to vector<8x1xf32>
    %12 = arith.maximumf %10, %11 : vector<8x1xf32>
    %13 = arith.mulf %8, %6 : vector<8x1xf32>
    %cst_7 = arith.constant 1.000000e+00 : f32
    %14 = vector.broadcast %cst_7 : f32 to vector<8x1xf32>
    %15 = arith.subf %14, %8 : vector<8x1xf32>
    %16 = arith.mulf %15, %12 : vector<8x1xf32>
    %17 = arith.mulf %16, %12 : vector<8x1xf32>
    %18 = arith.addf %13, %17 : vector<8x1xf32>
    %c8_i32 = arith.constant 8 : i32
    %19 = arith.muli %arg0, %c8_i32 : i32
    %20 = tpu.iota {dimensions = array<i32: 0>} : vector<8x1xi32>
    %21 = vector.broadcast %19 : i32 to vector<8x1xi32>
    %22 = arith.addi %21, %20 : vector<8x1xi32>
    %c8_i32_8 = arith.constant 8 : i32
    %23 = vector.broadcast %c8_i32_8 : i32 to vector<8x1xi32>
    %24 = arith.cmpi slt, %22, %23 : vector<8x1xi32>
    %cst_9 = arith.constant 0.000000e+00 : f32
    %25 = vector.broadcast %cst_9 : f32 to vector<8x1xf32>
    %26 = arith.select %24, %18, %25 : vector<8x1xi1>, vector<8x1xf32>
    %27 = vector.shape_cast %26 : vector<8x1xf32> to vector<1x8x1xf32>
    %cst_10 = arith.constant dense<0.000000e+00> : vector<1xf32>
    %28 = vector.multi_reduction <add>, %27, %cst_10 [1, 2] : vector<1x8x1xf32> to vector<1xf32>
    %29 = vector.shape_cast %28 : vector<1xf32> to vector<1x1x1xf32>
    %30 = vector.extract %29[0, 0, 0] : f32 from vector<1x1x1xf32>
    %31 = tpu.iota {dimensions = array<i32: 0>} : vector<8x128xi32>
    %32 = tpu.iota {dimensions = array<i32: 1>} : vector<8x128xi32>
    %c0_i32 = arith.constant 0 : i32
    %33 = vector.broadcast %c0_i32 : i32 to vector<8x128xi32>
    %34 = arith.cmpi eq, %31, %33 : vector<8x128xi32>
    %c0_i32_11 = arith.constant 0 : i32
    %35 = vector.broadcast %c0_i32_11 : i32 to vector<8x128xi32>
    %36 = arith.cmpi eq, %32, %35 : vector<8x128xi32>
    %37 = arith.andi %34, %36 : vector<8x128xi1>
    %cst_12 = arith.constant 0.000000e+00 : f32
    %38 = vector.broadcast %30 : f32 to vector<8x128xf32>
    %39 = vector.broadcast %cst_12 : f32 to vector<8x128xf32>
    %40 = arith.select %37, %38, %39 : vector<8x128xi1>, vector<8x128xf32>
    %c0_13 = arith.constant 0 : index
    %c0_14 = arith.constant 0 : index
    %41 = vector.load %arg5[%c0_13, %c0_14] : memref<8x128xf32, #tpu.memory_space<vmem>>, vector<8x128xf32>
    tpu.vector_store %arg5[%c0_13, %c0_14], %40 {strides = array<i32>} : memref<8x128xf32, #tpu.memory_space<vmem>>, vector<8x128xf32>,
    return
  }
  func.func @transform_0(%arg0: i32) -> i32 {
    %c0_i32 = arith.constant 0 : i32
    %c0_i32_0 = arith.constant 0 : i32
    return %c0_i32 : i32
  }
  func.func @transform_1(%arg0: i32) -> (i32, i32) {
    %c0_i32 = arith.constant 0 : i32
    %c0_i32_0 = arith.constant 0 : i32
    return %arg0, %c0_i32 : i32, i32
  }
  func.func @transform_2(%arg0: i32) -> (i32, i32) {
    %c0_i32 = arith.constant 0 : i32
    %c0_i32_0 = arith.constant 0 : i32
    return %arg0, %c0_i32 : i32, i32
  }
  func.func @transform_3(%arg0: i32) -> (i32, i32) {
    %c0_i32 = arith.constant 0 : i32
    %c0_i32_0 = arith.constant 0 : i32
    return %arg0, %c0_i32 : i32, i32
  }
  func.func @transform_4(%arg0: i32) -> (i32, i32) {
    %c0_i32 = arith.constant 0 : i32
    %c0_i32_0 = arith.constant 0 : i32
    return %arg0, %c0_i32 : i32, i32
  }
}

</mosaic_0001>

<llo_original>
// kernel: tpu_custom_call.1
$region0: #{tpu_custom_call.1}
  #allocation0 [shape = 'u32[]', space=smem, size = 0x4, offset = 0x4, fixed_abs, tag = 'smem constant byte address 0x4 - core index']
  #allocation1 [shape = 'u32[144,128]{1,0:T(1,128)}', space=vmem, size = 0x12000, scoped, tag = 'internal scratch']
  #allocation2 [shape = 'f32[1]{0:T(128)S(6)}', space=smem, size = 0x200, scoped, tag = 'scoped memory for tpu_custom_call.1']
  %s0 = inlined_call_operand.<no memory space> [shape: f32[1], index: 0, kind: input, shape index: {}]
  %s1 = inlined_call_operand.vmem [shape: f32[8,32], index: 1, kind: input, shape index: {}]
  %s2 = inlined_call_operand.hbm [shape: f32[8,32], index: 2, kind: input, shape index: {}]
  %s3 = inlined_call_operand.vmem [shape: f32[8,1], index: 3, kind: input, shape index: {}]
  %s4 = inlined_call_operand.hbm [shape: f32[8,128], index: 4, kind: output, shape index: {}]
  %s5 = sld [smem:[#allocation0]]
  $region30: #{tpu_custom_call.1} parent=0
    _
  %s7 = ssub.s32 1, %s5
  %s8 = scalar_select 0, %s7, %s5
  %9 = sst [smem:[#allocation2]] %s0
  $region1: #{tpu_custom_call.1} parent=0
    #allocation3 [shape = 'u8[4096]{0}', space=vmem, size = 0x1000, scoped, tag = 'input window, operand 2, single buffered']
    #allocation4 [shape = 's32[1]{0}', space=sflag, size = 0x4, scoped, tag = 'scoped memory for tpu_custom_call.1']
    #allocation5 [shape = 's32[1]{0}', space=sflag, size = 0x4, scoped, tag = 'scoped memory for tpu_custom_call.1']
    #allocation6 [shape = 'u8[4096]{0}', space=vmem, size = 0x1000, scoped, tag = 'output window, operand 0, single buffered']
    %10 = vsyncpa [#allocation4], 0
    %11 = vsyncpa [#allocation5], 0
    // Predicated region
    $region2: #{tpu_custom_call.1} parent=1 // pred_check
      _
    $region3: #{tpu_custom_call.1} parent=1 // pred_check_branch
      %13 = sbr.rel (0) target = $region5
    $region4: #{tpu_custom_call.1} parent=1 // pred_region
      _
    $region5: #{tpu_custom_call.1} parent=1 // pred_fallthru
      _
    // Predicated region
    $region6: #{tpu_custom_call.1} parent=1 // pred_check
      _
    $region7: #{tpu_custom_call.1} parent=1 // pred_check_branch
      %15 = sbr.rel (0) target = $region9
    $region8: #{tpu_custom_call.1} parent=1 // pred_region
      _
    $region9: #{tpu_custom_call.1} parent=1 // pred_fallthru
      _
    // Predicated region
    $region10: #{tpu_custom_call.1} parent=1 // pred_check
      _
    $region11: #{tpu_custom_call.1} parent=1 // pred_check_branch
      %17 = sbr.rel (0) target = $region13
    $region12: #{tpu_custom_call.1} parent=1 // pred_region
      %s19 = ssub.s32 128, 128
      %20 = vsyncadd [#allocation4], %s19
      %s22 = sshll.u32 [#allocation3], 4
      %s23 = int_to_ptr.vmem [resolvable:$true] %s22
      %25 = dma.hbm_to_vmem [thread:$0]  %s2, 128, %s23, [#allocation4]
    $region13: #{tpu_custom_call.1} parent=1 // pred_fallthru
      _
    // Predicated region
    $region14: #{tpu_custom_call.1} parent=1 // pred_check
      _
    $region15: #{tpu_custom_call.1} parent=1 // pred_check_branch
      %27 = sbr.rel (0) target = $region17
    $region16: #{tpu_custom_call.1} parent=1 // pred_region
      _
    $region17: #{tpu_custom_call.1} parent=1 // pred_fallthru
      _
    // Predicated region
    $region18: #{tpu_custom_call.1} parent=1 // pred_check
      _
    $region19: #{tpu_custom_call.1} parent=1 // pred_check_branch
      %29 = sbr.rel (0) target = $region21
    $region20: #{tpu_custom_call.1} parent=1 // pred_region
      %30 = dma.done [#allocation4], 128
    $region21: #{tpu_custom_call.1} parent=1 // pred_fallthru
      _
    %s31 = sld [smem:[#allocation2]]
    %v32 = vld [vmem:[%s1] sm:$0xff]
    %v33 = vld [vmem:[#allocation3] sm:$0xff]
    %v34 = vsub.f32 %v32, %v33
    %v35 = vmul.f32 %v34, %v34
    %vm36 = vcmask 261120
    %v37 = vsel %vm36, %v35, 0.0
    %38 = vadd.xlane.f32.xlu0 %v37
    %v39 = vpop.xlane.xlu0 %38
    %v40 = vrsqrt.pop %v39
    %v41 = vmul.f32 %v39, %v40
    %vm42 = vcmp.eq.f32.partialorder %v39, inf
    %v43 = vsel %vm42, %v39, %v41
    %vm44 = vcmp.eq.f32.partialorder %v39, 0.0
    %v45 = vand.u32 %v39, 2147483648
    %v46 = vsel %vm44, %v45, %v43
    %v47 = vld [vmem:[%s3] sm:$0xff]
    %v48 = vstv %s31
    %v49 = vsub.f32 %v48, %v46
    %v50 = vmax.f32 %v49, 0.0
    %v51 = vmul.f32 %v47, %v39
    %v52 = vsub.f32 1.0, %v47
    %v53 = vmul.f32 %v52, %v50
    %v54 = vmul.f32 %v53, %v50
    %v55 = vadd.f32 %v51, %v54
    %s56 = smul.u32 0, 8
    %v57 = vlaneseq
    %v58 = vshrl.u32 %v57, 7
    %v59 = vstv %s56
    %v60 = vadd.s32 %v59, %v58
    %vm61 = vcmp.lt.s32.totalorder %v60, 8
    %v62 = vsel %vm61, %v55, 0.0
    %vm63 = vcmask 7168
    %v64 = vsel %vm63, %v62, 0.0
    %65 = vadd.xlane.f32.xlu0 %v64
    %v66 = vpop.xlane.xlu0 %65
    %v67 = vrot.slane %v66, 4
    %v68 = vadd.f32 %v66, %v67
    %v69 = vrot.slane %v68, 2
    %v70 = vadd.f32 %v68, %v69
    %v71 = vrot.slane %v70, 1
    %v72 = vadd.f32 %v70, %v71
    %s73 = vtos %v72
    %v74 = vlaneseq
    %v75 = vand.u32 %v74, 127
    %vm76 = vcmp.eq.s32.totalorder %v58, 0
    %vm77 = vcmp.eq.s32.totalorder %v75, 0
    %vm78 = vmand %vm76, %vm77
    %v79 = vstv %s73
    %v80 = vsel %vm78, %v79, 0.0
    %81 = vst [vmem:[#allocation6] sm:$0xff] %v80
    // Predicated region
    $region22: #{tpu_custom_call.1} parent=1 // pred_check
      _
    $region23: #{tpu_custom_call.1} parent=1 // pred_check_branch
      %83 = sbr.rel (0) target = $region25
    $region24: #{tpu_custom_call.1} parent=1 // pred_region
      %s85 = ssub.s32 128, 128
      %86 = vsyncadd [#allocation5], %s85
      %s88 = sshll.u32 [#allocation6], 4
      %s89 = int_to_ptr.vmem [resolvable:$true] %s88
      %91 = dma.vmem_to_hbm [thread:$0]  %s89, 128, %s4, [#allocation5]
    $region25: #{tpu_custom_call.1} parent=1 // pred_fallthru
      _
    // Predicated region
    $region26: #{tpu_custom_call.1} parent=1 // pred_check
      _
    $region27: #{tpu_custom_call.1} parent=1 // pred_check_branch
      %93 = sbr.rel (0) target = $region29
    $region28: #{tpu_custom_call.1} parent=1 // pred_region
      %94 = dma.done [#allocation5], 128
    $region29: #{tpu_custom_call.1} parent=1 // pred_fallthru
      _
    %95 = vsyncpa [#allocation4], 1
    %96 = vsyncpa [#allocation5], 1

</llo_original>
